<compile_context>
chip_gen: v5e
topology: v5e:2x2
jax: 0.10.0
libtpu: 0.0.40
codegen_flags: <defaults>
</compile_context>

<pallas_src>
import functools

import jax
import jax.numpy as jnp
from jax import lax
from jax.experimental import pallas as pl
from jax.experimental.pallas import tpu as pltpu

_EPS = 1e-12  # matches torch.nn.functional.normalize default eps


# --------------------------------------------------------------------------- #
# math helpers (avoid EUP transcendentals for the common exponents)
# --------------------------------------------------------------------------- #
def _pow_p(x, p):
    """x ** p without EUP transcendentals for the common exponents."""
    if p == 2.0:
        return jnp.square(x)
    if p == 1.0:
        return x
    if float(p).is_integer() and 1.0 < p <= 8.0:
        return lax.integer_pow(x, int(p))  # repeated multiplies (VPU)
    return x ** p  # general fallback: exp(p*log(x)) on the EUP


def _root_p(x, p):
    """x ** (1/p) without EUP pow for the common exponents."""
    if p == 2.0:
        return jnp.sqrt(x)
    if p == 1.0:
        return x
    return x ** (1.0 / p)


# --------------------------------------------------------------------------- #
# kernel
# --------------------------------------------------------------------------- #
def _weight_norm_kernel(w_ref, att_ref, out_ref, *, p):
    """Per-row L_p weighted norms of `weights` and `weights - 1`.

    w_ref   : [TB, S]  per-token weights (any dtype; cast to f32 in-body)
    att_ref : [TB, S]  attention values (the `text_attention * 1.0` operand)
    out_ref : [TB, 2]  column 0: (w     ** p * normalize(att,1)).sum(1)^(1/p)
                       column 1: ((w-1) ** p * normalize(att,1)).sum(1)^(1/p)
    """
    w = w_ref[...].astype(jnp.float32)
    att = att_ref[...].astype(jnp.float32)

    # f.normalize(att, p=1, dim=1) denominator (|att| to match torch exactly).
    denom = jnp.maximum(jnp.sum(jnp.abs(att), axis=1, keepdims=True), _EPS)
    inv_denom = 1.0 / denom  # [TB, 1] exact per-row reciprocal — cheap

    # Fused normalize: sum(w^p * att) / denom == sum(w^p * att_n)  (sum linear).
    s_w = jnp.sum(_pow_p(w, p) * att, axis=1, keepdims=True)
    s_w1 = jnp.sum(_pow_p(w - 1.0, p) * att, axis=1, keepdims=True)

    # Single fused output block -> one output DMA per grid step.
    out_ref[:, 0:1] = _root_p(s_w * inv_denom, p)
    out_ref[:, 1:2] = _root_p(s_w1 * inv_denom, p)


# --------------------------------------------------------------------------- #
# tiling helpers
# --------------------------------------------------------------------------- #
def _sublane_multiple(dtype):
    """Packed-sublane multiple for a dtype (8 f32, 16 bf16, 32 int8)."""
    return max(8, 32 // max(1, jnp.dtype(dtype).itemsize))


def _vmem_capacity_bytes():
    """Best-effort physical-VMEM query; falls back to the 128 MiB parts."""
    try:
        info = pltpu.get_tpu_info()
        v = getattr(info, "vmem_capacity_bytes", None)
        if v:
            return int(v)
    except Exception:
        pass
    try:
        kind = jax.devices()[0].device_kind.lower()
        if "v7" in kind:
            return 64 << 20
    except Exception:
        pass
    return 128 << 20


def _round_up(x, m):
    return (x + m - 1) // m * m


# --------------------------------------------------------------------------- #
# wrapper
# --------------------------------------------------------------------------- #
def weighting_model_norms(weights, text_attention, *, norm=2.0, c_norm=0.1,
                          norm_from_one=True, block_rows=None):
    """Pallas wrapper reproducing the weight-norm metrics of WeightingModel.step().

    Returns (weight_norm [B], weight_norm_from_one [B], avg_norm,
             avg_norm_from_one, norm_penalty) where
    norm_penalty = c_norm * (avg_norm_from_one if norm_from_one else avg_norm).
    """
    B, S = weights.shape
    p = float(norm)

    # ---- generation-aware VMEM budget ------------------------------------
    phys_vmem = _vmem_capacity_bytes()
    if phys_vmem <= (64 << 20):          # v7x-class: 64 MiB VMEM per TC
        per_input_budget = 4 << 20       # 2 inputs x 2 buffers x 4 MiB = 16 MiB
        vmem_limit = 48 << 20
    else:                                # v5e / v6e: 128 MiB physical VMEM
        per_input_budget = 8 << 20       # 2 inputs x 2 buffers x 8 MiB = 32 MiB
        vmem_limit = 96 << 20

    # ---- dtype-aware, sublane-aligned batch tile --------------------------
    align = max(_sublane_multiple(weights.dtype),
                _sublane_multiple(text_attention.dtype))
    itemsize = max(jnp.dtype(weights.dtype).itemsize,
                   jnp.dtype(text_attention.dtype).itemsize)
    row_bytes = max(S * itemsize, 1)

    if block_rows is not None:
        tb = max(align, _round_up(int(block_rows), align))
    else:
        tb = max(align, (per_input_budget // row_bytes) // align * align)
        # Keep >= ~4 grid steps when the batch is big enough, so the DMA
        # pipeline double-buffers and v7x's two TensorCores both get work.
        min_steps = 4
        tb = min(tb, max(align, _round_up(pl.cdiv(B, min_steps), align)))
    tb = min(tb, _round_up(B, align))    # never bigger than the (padded) batch

    grid = (pl.cdiv(B, tb),)             # ragged last block handled by Pallas

    kernel = functools.partial(_weight_norm_kernel, p=p)

    out = pl.pallas_call(
        kernel,
        out_shape=jax.ShapeDtypeStruct((B, 2), jnp.float32),
        grid=grid,
        in_specs=[
            pl.BlockSpec((tb, S), lambda i: (i, 0)),
            pl.BlockSpec((tb, S), lambda i: (i, 0)),
        ],
        out_specs=pl.BlockSpec((tb, 2), lambda i: (i, 0)),
        compiler_params=pltpu.CompilerParams(
            dimension_semantics=("parallel",),   # megacore split on v7x
            vmem_limit_bytes=vmem_limit,
        ),
    )(weights, text_attention)

    wn = out[:, 0]
    wn1 = out[:, 1]
    avg_norm = jnp.mean(wn)
    avg_norm_from_one = jnp.mean(wn1)
    penalty = c_norm * (avg_norm_from_one if norm_from_one else avg_norm)
    return wn, wn1, avg_norm, avg_norm_from_one, penalty


# --------------------------------------------------------------------------- #
# pure-JAX reference of the PyTorch step() norm math
# --------------------------------------------------------------------------- #
def _reference(weights, text_attention, p=2.0):
    att = text_attention.astype(jnp.float32)
    denom = jnp.maximum(jnp.sum(jnp.abs(att), axis=1, keepdims=True), _EPS)
    att_n = att / denom
    w = weights.astype(jnp.float32)
    wn = jnp.sum(w ** p * att_n, axis=1) ** (1.0 / p)
    wn1 = jnp.sum((w - 1.0) ** p * att_n, axis=1) ** (1.0 / p)
    return wn, wn1


if __name__ == "__main__":
    key = jax.random.PRNGKey(0)
    B, S = 512, 256  # small shapes; 128-row tiles -> 4 pipelined grid steps

    k_w, _ = jax.random.split(key)
    # Narrow inputs (bf16): halves the HBM traffic of this mem-bound kernel.
    # Positive per-token weights (what a softplus weighting head would emit).
    weights = jax.nn.softplus(
        jax.random.normal(k_w, (B, S), dtype=jnp.float32)).astype(jnp.bfloat16)
    # Attention mask: ones followed by padding zeros (deterministic lengths 8..256).
    lengths = (jnp.arange(B, dtype=jnp.int32) % 32) * 8 + 8
    text_attention = (jnp.arange(S)[None, :] < lengths[:, None]).astype(jnp.bfloat16)

    wn, wn1, avg_norm, avg_norm_from_one, penalty = weighting_model_norms(
        weights, text_attention, norm=2.0, c_norm=0.1, norm_from_one=True)
    jax.block_until_ready((wn, wn1, avg_norm, avg_norm_from_one, penalty))

    # Correctness check against a pure-JAX reference of the PyTorch math.
    ref_wn, ref_wn1 = _reference(weights, text_attention, p=2.0)
    assert jnp.allclose(wn, ref_wn, atol=1e-5, rtol=1e-5)
    assert jnp.allclose(wn1, ref_wn1, atol=1e-5, rtol=1e-5)
    assert jnp.allclose(penalty, 0.1 * jnp.mean(ref_wn1), atol=1e-6, rtol=1e-5)

    print("KERNEL_OK")
</pallas_src>

<mosaic_0001>
module attributes {stable_mosaic.version = 11 : i64} {
  func.func @_weight_norm_kernel(%arg0: i32, %arg1: memref<128x256xbf16, #tpu.memory_space<vmem>>, %arg2: memref<128x256xbf16, #tpu.memory_space<vmem>>, %arg3: memref<128x2xf32, #tpu.memory_space<vmem>>) attributes {dimension_semantics = [#tpu.dimension_semantics<parallel>], iteration_bounds = array<i64: 4>, scalar_prefetch = 0 : i64, scratch_operands = 0 : i64, tpu.core_type = #tpu.core_type<tc>, window_params = [{transform_indices = @transform_0, window_bounds = array<i64: 128, 256>}, {transform_indices = @transform_1, window_bounds = array<i64: 128, 256>}, {transform_indices = @transform_2, window_bounds = array<i64: 128, 2>}]} {
    %c0 = arith.constant 0 : index
    %c0_0 = arith.constant 0 : index
    %0 = vector.load %arg1[%c0, %c0_0] : memref<128x256xbf16, #tpu.memory_space<vmem>>, vector<128x256xbf16>
    %1 = arith.extf %0 : vector<128x256xbf16> to vector<128x256xf32>
    %c0_1 = arith.constant 0 : index
    %c0_2 = arith.constant 0 : index
    %2 = vector.load %arg2[%c0_1, %c0_2] : memref<128x256xbf16, #tpu.memory_space<vmem>>, vector<128x256xbf16>
    %3 = arith.extf %2 : vector<128x256xbf16> to vector<128x256xf32>
    %4 = math.absf %3 : vector<128x256xf32>
    %cst = arith.constant dense<0.000000e+00> : vector<128xf32>
    %5 = vector.multi_reduction <add>, %4, %cst [1] : vector<128x256xf32> to vector<128xf32>
    %6 = vector.shape_cast %5 : vector<128xf32> to vector<128x1xf32>
    %cst_3 = arith.constant 9.99999996E-13 : f32
    %7 = vector.broadcast %cst_3 : f32 to vector<128x1xf32>
    %8 = arith.maximumf %6, %7 : vector<128x1xf32>
    %cst_4 = arith.constant 1.000000e+00 : f32
    %9 = vector.broadcast %cst_4 : f32 to vector<128x1xf32>
    %10 = arith.divf %9, %8 : vector<128x1xf32>
    %11 = arith.mulf %1, %1 : vector<128x256xf32>
    %12 = arith.mulf %11, %3 : vector<128x256xf32>
    %cst_5 = arith.constant dense<0.000000e+00> : vector<128xf32>
    %13 = vector.multi_reduction <add>, %12, %cst_5 [1] : vector<128x256xf32> to vector<128xf32>
    %14 = vector.shape_cast %13 : vector<128xf32> to vector<128x1xf32>
    %cst_6 = arith.constant 1.000000e+00 : f32
    %15 = vector.broadcast %cst_6 : f32 to vector<128x256xf32>
    %16 = arith.subf %1, %15 : vector<128x256xf32>
    %17 = arith.mulf %16, %16 : vector<128x256xf32>
    %18 = arith.mulf %17, %3 : vector<128x256xf32>
    %cst_7 = arith.constant dense<0.000000e+00> : vector<128xf32>
    %19 = vector.multi_reduction <add>, %18, %cst_7 [1] : vector<128x256xf32> to vector<128xf32>
    %20 = vector.shape_cast %19 : vector<128xf32> to vector<128x1xf32>
    %21 = arith.mulf %14, %10 : vector<128x1xf32>
    %22 = math.sqrt %21 : vector<128x1xf32>
    %c0_8 = arith.constant 0 : index
    %c0_9 = arith.constant 0 : index
    %23 = vector.load %arg3[%c0_8, %c0_9] : memref<128x2xf32, #tpu.memory_space<vmem>>, vector<128x1xf32>
    tpu.vector_store %arg3[%c0_8, %c0_9], %22 {strides = array<i32>} : memref<128x2xf32, #tpu.memory_space<vmem>>, vector<128x1xf32>,
    %24 = arith.mulf %20, %10 : vector<128x1xf32>
    %25 = math.sqrt %24 : vector<128x1xf32>
    %c0_10 = arith.constant 0 : index
    %c1 = arith.constant 1 : index
    %26 = vector.load %arg3[%c0_10, %c1] : memref<128x2xf32, #tpu.memory_space<vmem>>, vector<128x1xf32>
    tpu.vector_store %arg3[%c0_10, %c1], %25 {strides = array<i32>} : memref<128x2xf32, #tpu.memory_space<vmem>>, vector<128x1xf32>,
    return
  }
  func.func @transform_0(%arg0: i32) -> (i32, i32) {
    %c0_i32 = arith.constant 0 : i32
    %c0_i32_0 = arith.constant 0 : i32
    return %arg0, %c0_i32 : i32, i32
  }
  func.func @transform_1(%arg0: i32) -> (i32, i32) {
    %c0_i32 = arith.constant 0 : i32
    %c0_i32_0 = arith.constant 0 : i32
    return %arg0, %c0_i32 : i32, i32
  }
  func.func @transform_2(%arg0: i32) -> (i32, i32) {
    %c0_i32 = arith.constant 0 : i32
    %c0_i32_0 = arith.constant 0 : i32
    return %arg0, %c0_i32 : i32, i32
  }
}

</mosaic_0001>

<llo_original>
// kernel: tpu_custom_call.1
$region0: #{tpu_custom_call.1}
  #allocation0 [shape = 'u32[]', space=smem, size = 0x4, offset = 0x4, fixed_abs, tag = 'smem constant byte address 0x4 - core index']
  #allocation1 [shape = 'u32[72,128]{1,0:T(1,128)}', space=vmem, size = 0x9000, scoped, tag = 'internal scratch']
  %s0 = inlined_call_operand.hbm [shape: bf16[512,256], index: 0, kind: input, shape index: {}]
  %s1 = inlined_call_operand.hbm [shape: bf16[512,256], index: 1, kind: input, shape index: {}]
  %s2 = inlined_call_operand.vmem [shape: f32[512,2], index: 2, kind: output, shape index: {}]
  %s3 = sld [smem:[#allocation0]]
  $region49: #{tpu_custom_call.1} parent=0
    _
  %s5 = ssub.s32 1, %s3
  %s6 = scalar_select 0, %s5, %s3
  $region1: #{tpu_custom_call.1} parent=0
    #allocation2 [shape = 'u8[131072]{0}', space=vmem, size = 0x20000, scoped, tag = 'input window, operand 0']
    #allocation3 [shape = 's32[2]{0}', space=sflag, size = 0x8, scoped, tag = 'scoped memory for tpu_custom_call.1']
    #allocation4 [shape = 'u8[131072]{0}', space=vmem, size = 0x20000, scoped, tag = 'input window, operand 1']
    #allocation5 [shape = 's32[2]{0}', space=sflag, size = 0x8, scoped, tag = 'scoped memory for tpu_custom_call.1']
    %7 = vsyncpa [#allocation3], 0
    %s8 = scalar_lea.sflag [#allocation3], 1
    %9 = vsyncpa %s8, 0
    %10 = vsyncpa [#allocation5], 0
    %s11 = scalar_lea.sflag [#allocation5], 1
    %12 = vsyncpa %s11, 0
    loop: start=0, step=1, limit=6
    $region2: #{tpu_custom_call.1} parent=1 // loop_pre_header
      _
    $region3: #{tpu_custom_call.1} parent=1 // loop_header
      %s14 = sphi 0, %s18
      %p15 = scmp.ge.s32.totalorder %s14, 6
      %s24 = sphi 0, %s26
      %s27 = sphi 0, %s24
      %s28 = sphi 0, %s27
      %s44 = sphi 0, %s28
      %s50 = sphi 0, %s52
      %s53 = sphi 0, %s50
      %s54 = sphi 0, %s53
      %s70 = sphi 0, %s54
      %s76 = sphi 0, %s78
      %s79 = sphi 0, %s76
      %s80 = sphi 0, %s79
      %s96 = sphi 0, %s80
    $region4: #{tpu_custom_call.1} parent=1 // loop_header_branch
      %17 = sbr.rel (%p15) target = $region8
    $region5: #{tpu_custom_call.1} parent=1 // loop_body
      %s19 = ssub.s32 %s14, 1
      %s20 = ssub.s32 %s14, 2
      %s21 = sadd.s32 %s14, 1
      %s22 = ssub.s32 %s14, %s21
      %p23 = scmp.eq.s32.totalorder %s22, 0
      %s25 = sadd.s32 %s24, 1
      %s26 = scalar_select %p23, %s24, %s25
      %p29 = pneg %p23
      %p30 = scmp.eq.s32.totalorder %s14, 3
      %p31 = por %p29, %p30
      %p32 = scmp.ne.s32.totalorder %s24, %s27
      %p33 = scmp.eq.s32.totalorder %s14, 0
      %p34 = por %p32, %p33
      %p35 = scmp.ne.s32.totalorder %s24, %s27
      %p36 = scmp.eq.s32.totalorder %s19, 3
      %p37 = por %p35, %p36
      %p38 = scmp.ne.s32.totalorder %s27, %s28
      %p39 = scmp.eq.s32.totalorder %s19, 0
      %p40 = por %p38, %p39
      %p41 = scmp.ne.s32.totalorder %s27, %s28
      %p42 = scmp.eq.s32.totalorder %s20, 3
      %p43 = por %p41, %p42
      %p45 = scmp.ne.s32.totalorder %s28, %s44
      %p46 = scmp.eq.s32.totalorder %s20, 0
      %p47 = por %p45, %p46
      %s48 = ssub.s32 %s14, %s21
      %p49 = scmp.eq.s32.totalorder %s48, 0
      %s51 = sadd.s32 %s50, 1
      %s52 = scalar_select %p49, %s50, %s51
      %p55 = pneg %p49
      %p56 = scmp.eq.s32.totalorder %s14, 3
      %p57 = por %p55, %p56
      %p58 = scmp.ne.s32.totalorder %s50, %s53
      %p59 = scmp.eq.s32.totalorder %s14, 0
      %p60 = por %p58, %p59
      %p61 = scmp.ne.s32.totalorder %s50, %s53
      %p62 = scmp.eq.s32.totalorder %s19, 3
      %p63 = por %p61, %p62
      %p64 = scmp.ne.s32.totalorder %s53, %s54
      %p65 = scmp.eq.s32.totalorder %s19, 0
      %p66 = por %p64, %p65
      %p67 = scmp.ne.s32.totalorder %s53, %s54
      %p68 = scmp.eq.s32.totalorder %s20, 3
      %p69 = por %p67, %p68
      %p71 = scmp.ne.s32.totalorder %s54, %s70
      %p72 = scmp.eq.s32.totalorder %s20, 0
      %p73 = por %p71, %p72
      %s74 = ssub.s32 %s14, %s21
      %p75 = scmp.eq.s32.totalorder %s74, 0
      %s77 = sadd.s32 %s76, 1
      %s78 = scalar_select %p75, %s76, %s77
      %p81 = pneg %p75
      %p82 = scmp.eq.s32.totalorder %s14, 3
      %p83 = por %p81, %p82
      %p84 = scmp.ne.s32.totalorder %s76, %s79
      %p85 = scmp.eq.s32.totalorder %s14, 0
      %p86 = por %p84, %p85
      %p87 = scmp.ne.s32.totalorder %s76, %s79
      %p88 = scmp.eq.s32.totalorder %s19, 3
      %p89 = por %p87, %p88
      %p90 = scmp.ne.s32.totalorder %s79, %s80
      %p91 = scmp.eq.s32.totalorder %s19, 0
      %p92 = por %p90, %p91
      %p93 = scmp.ne.s32.totalorder %s79, %s80
      %p94 = scmp.eq.s32.totalorder %s20, 3
      %p95 = por %p93, %p94
      %p97 = scmp.ne.s32.totalorder %s80, %s96
      %p98 = scmp.eq.s32.totalorder %s20, 0
      %p99 = por %p97, %p98
      %p100 = scmp.le.s32.totalorder 1, %s14
      %p101 = scmp.lt.s32.totalorder %s14, 5
      %p102 = pnand %p100, %p101
      %p103 = pneg %p102
      // Predicated region
      $region9: #{tpu_custom_call.1} parent=5 // pred_check
        _
      $region10: #{tpu_custom_call.1} parent=5 // pred_check_branch
        %105 = sbr.rel (%p102) target = $region12
      $region11: #{tpu_custom_call.1} parent=5 // pred_region
        %s106 = ssub.s32 %s14, 1
      $region12: #{tpu_custom_call.1} parent=5 // pred_fallthru
        _
      %p107 = scmp.lt.s32.totalorder %s14, 4
      // Predicated region
      $region13: #{tpu_custom_call.1} parent=5 // pred_check
        %p108 = pneg %p107
      $region14: #{tpu_custom_call.1} parent=5 // pred_check_branch
        %110 = sbr.rel (%p108) target = $region16
      $region15: #{tpu_custom_call.1} parent=5 // pred_region
        // Predicated region
        $region17: #{tpu_custom_call.1} parent=15 // pred_check
          %p111 = pneg %p34
        $region18: #{tpu_custom_call.1} parent=15 // pred_check_branch
          %113 = sbr.rel (%p111) target = $region20
        $region19: #{tpu_custom_call.1} parent=15 // pred_region
          %s114 = sand.u32 %s24, 1
          %s115 = scalar_lea.sflag [#allocation3], %s114
          %s116 = sand.u32 %s24, 1
          %s117 = smul.addr %s116, 128
          %s118 = scalar_lea.vmem [#allocation2], %s117
          %s119 = smul.u32 16, %s14
          %121 = vsyncadd %s115, 0
          %s122 = smul.addr %s119, 2
          %s123 = smul.addr %s122, 4
          %s124 = scalar_lea.hbm %s0, %s123
          %s125 = sshll.u32 %s124, 4
          %s126 = int_to_ptr.hbm [resolvable:$true] %s125
          %s127 = sshll.u32 %s118, 4
          %s128 = int_to_ptr.vmem [resolvable:$true] %s127
          %133 = dma.hbm_to_vmem [thread:$0]  %s126, 2048, %s128, %s115, 128, 128, 8
        $region20: #{tpu_custom_call.1} parent=15 // pred_fallthru
          _
        // Predicated region
        $region21: #{tpu_custom_call.1} parent=15 // pred_check
          %p134 = pneg %p60
        $region22: #{tpu_custom_call.1} parent=15 // pred_check_branch
          %136 = sbr.rel (%p134) target = $region24
        $region23: #{tpu_custom_call.1} parent=15 // pred_region
          %s137 = sand.u32 %s50, 1
          %s138 = scalar_lea.sflag [#allocation5], %s137
          %s139 = sand.u32 %s50, 1
          %s140 = smul.addr %s139, 128
          %s141 = scalar_lea.vmem [#allocation4], %s140
          %s142 = smul.u32 16, %s14
          %144 = vsyncadd %s138, 0
          %s145 = smul.addr %s142, 2
          %s146 = smul.addr %s145, 4
          %s147 = scalar_lea.hbm %s1, %s146
          %s148 = sshll.u32 %s147, 4
          %s149 = int_to_ptr.hbm [resolvable:$true] %s148
          %s150 = sshll.u32 %s141, 4
          %s151 = int_to_ptr.vmem [resolvable:$true] %s150
          %156 = dma.hbm_to_vmem [thread:$0]  %s149, 2048, %s151, %s138, 128, 128, 8
        $region24: #{tpu_custom_call.1} parent=15 // pred_fallthru
          _
      $region16: #{tpu_custom_call.1} parent=5 // pred_fallthru
        _
      %p157 = scmp.le.s32.totalorder 1, %s14
      %p158 = scmp.lt.s32.totalorder %s14, 5
      %p159 = pnand %p157, %p158
      %p160 = pneg %p159
      // Predicated region
      $region25: #{tpu_custom_call.1} parent=5 // pred_check
        _
      $region26: #{tpu_custom_call.1} parent=5 // pred_check_branch
        %162 = sbr.rel (%p159) target = $region28
      $region27: #{tpu_custom_call.1} parent=5 // pred_region
        %s163 = ssub.s32 %s14, 1
        %s164 = sand.u32 %s27, 1
        %s165 = scalar_lea.sflag [#allocation3], %s164
        %s166 = sand.u32 %s27, 1
        %s167 = smul.addr %s166, 128
        %s168 = scalar_lea.vmem [#allocation2], %s167
        // Predicated region
        $region29: #{tpu_custom_call.1} parent=27 // pred_check
          %p169 = pneg %p40
        $region30: #{tpu_custom_call.1} parent=27 // pred_check_branch
          %171 = sbr.rel (%p169) target = $region32
        $region31: #{tpu_custom_call.1} parent=27 // pred_region
          %173 = dma.done %s165, 2048
        $region32: #{tpu_custom_call.1} parent=27 // pred_fallthru
          _
        %s174 = sand.u32 %s53, 1
        %s175 = scalar_lea.sflag [#allocation5], %s174
        %s176 = sand.u32 %s53, 1
        %s177 = smul.addr %s176, 128
        %s178 = scalar_lea.vmem [#allocation4], %s177
        // Predicated region
        $region33: #{tpu_custom_call.1} parent=27 // pred_check
          %p179 = pneg %p66
        $region34: #{tpu_custom_call.1} parent=27 // pred_check_branch
          %181 = sbr.rel (%p179) target = $region36
        $region35: #{tpu_custom_call.1} parent=27 // pred_region
          %183 = dma.done %s175, 2048
        $region36: #{tpu_custom_call.1} parent=27 // pred_fallthru
          _
        %s184 = sand.u32 %s27, 1
        %s185 = scalar_lea.sflag [#allocation3], %s184
        %s186 = sand.u32 %s27, 1
        %s187 = smul.addr %s186, 128
        %s188 = scalar_lea.vmem [#allocation2], %s187
        %p189 = pneg %p40
        %p190 = pneg %p37
        %s191 = sand.u32 %s53, 1
        %s192 = scalar_lea.sflag [#allocation5], %s191
        %s193 = sand.u32 %s53, 1
        %s194 = smul.addr %s193, 128
        %s195 = scalar_lea.vmem [#allocation4], %s194
        %p196 = pneg %p66
        %p197 = pneg %p63
        %p198 = pneg %p92
        %p199 = pneg %p89
        %s200 = smul.u32 16, %s19
        %p201 = scmp.lt.s32.totalorder %s200, 63
        %s202 = scalar_select %p201, %s200, 63
        %s203 = smul.addr %s202, 8
        %s204 = scalar_lea.vmem %s2, %s203
        %s205 = smul.u32 16, %s19
        %s206 = smul.u32 16, %s19
        %s207 = smul.u32 16, %s19
        %p208 = scmp.lt.s32.totalorder %s207, 63
        %s209 = scalar_select %p208, %s207, 63
        %s210 = smul.addr %s209, 8
        %s211 = scalar_lea.vmem %s2, %s210
        %s212 = smul.u32 16, %s19
        %v213 = vld [vmem:[%s168] sm:$0xff]
        %v214 = vld [vmem:[%s168 + $0x8] sm:$0xff]
        %v215 = vld [vmem:[%s168 + $0x10] sm:$0xff]
        %v216 = vld [vmem:[%s168 + $0x18] sm:$0xff]
        %v217 = vld [vmem:[%s168 + $0x20] sm:$0xff]
        %v218 = vld [vmem:[%s168 + $0x28] sm:$0xff]
        %v219 = vld [vmem:[%s168 + $0x30] sm:$0xff]
        %v220 = vld [vmem:[%s168 + $0x38] sm:$0xff]
        %v221 = vld [vmem:[%s168 + $0x40] sm:$0xff]
        %v222 = vld [vmem:[%s168 + $0x48] sm:$0xff]
        %v223 = vld [vmem:[%s168 + $0x50] sm:$0xff]
        %v224 = vld [vmem:[%s168 + $0x58] sm:$0xff]
        %v225 = vld [vmem:[%s168 + $0x60] sm:$0xff]
        %v226 = vld [vmem:[%s168 + $0x68] sm:$0xff]
        %v227 = vld [vmem:[%s168 + $0x70] sm:$0xff]
        %v228 = vld [vmem:[%s168 + $0x78] sm:$0xff]
        %v229 = vunpack.c.l.bf16 %v213
        %v230 = vunpack.c.h.bf16 %v213
        %v231 = vunpack.c.l.bf16 %v214
        %v232 = vunpack.c.h.bf16 %v214
        %v233 = vunpack.c.l.bf16 %v215
        %v234 = vunpack.c.h.bf16 %v215
        %v235 = vunpack.c.l.bf16 %v216
        %v236 = vunpack.c.h.bf16 %v216
        %v237 = vunpack.c.l.bf16 %v217
        %v238 = vunpack.c.h.bf16 %v217
        %v239 = vunpack.c.l.bf16 %v218
        %v240 = vunpack.c.h.bf16 %v218
        %v241 = vunpack.c.l.bf16 %v219
        %v242 = vunpack.c.h.bf16 %v219
        %v243 = vunpack.c.l.bf16 %v220
        %v244 = vunpack.c.h.bf16 %v220
        %v245 = vunpack.c.l.bf16 %v221
        %v246 = vunpack.c.h.bf16 %v221
        %v247 = vunpack.c.l.bf16 %v222
        %v248 = vunpack.c.h.bf16 %v222
        %v249 = vunpack.c.l.bf16 %v223
        %v250 = vunpack.c.h.bf16 %v223
        %v251 = vunpack.c.l.bf16 %v224
        %v252 = vunpack.c.h.bf16 %v224
        %v253 = vunpack.c.l.bf16 %v225
        %v254 = vunpack.c.h.bf16 %v225
        %v255 = vunpack.c.l.bf16 %v226
        %v256 = vunpack.c.h.bf16 %v226
        %v257 = vunpack.c.l.bf16 %v227
        %v258 = vunpack.c.h.bf16 %v227
        %v259 = vunpack.c.l.bf16 %v228
        %v260 = vunpack.c.h.bf16 %v228
        %v261 = vld [vmem:[%s178] sm:$0xff]
        %v262 = vld [vmem:[%s178 + $0x8] sm:$0xff]
        %v263 = vld [vmem:[%s178 + $0x10] sm:$0xff]
        %v264 = vld [vmem:[%s178 + $0x18] sm:$0xff]
        %v265 = vld [vmem:[%s178 + $0x20] sm:$0xff]
        %v266 = vld [vmem:[%s178 + $0x28] sm:$0xff]
        %v267 = vld [vmem:[%s178 + $0x30] sm:$0xff]
        %v268 = vld [vmem:[%s178 + $0x38] sm:$0xff]
        %v269 = vld [vmem:[%s178 + $0x40] sm:$0xff]
        %v270 = vld [vmem:[%s178 + $0x48] sm:$0xff]
        %v271 = vld [vmem:[%s178 + $0x50] sm:$0xff]
        %v272 = vld [vmem:[%s178 + $0x58] sm:$0xff]
        %v273 = vld [vmem:[%s178 + $0x60] sm:$0xff]
        %v274 = vld [vmem:[%s178 + $0x68] sm:$0xff]
        %v275 = vld [vmem:[%s178 + $0x70] sm:$0xff]
        %v276 = vld [vmem:[%s178 + $0x78] sm:$0xff]
        %v277 = vunpack.c.l.bf16 %v261
        %v278 = vunpack.c.h.bf16 %v261
        %v279 = vunpack.c.l.bf16 %v262
        %v280 = vunpack.c.h.bf16 %v262
        %v281 = vunpack.c.l.bf16 %v263
        %v282 = vunpack.c.h.bf16 %v263
        %v283 = vunpack.c.l.bf16 %v264
        %v284 = vunpack.c.h.bf16 %v264
        %v285 = vunpack.c.l.bf16 %v265
        %v286 = vunpack.c.h.bf16 %v265
        %v287 = vunpack.c.l.bf16 %v266
        %v288 = vunpack.c.h.bf16 %v266
        %v289 = vunpack.c.l.bf16 %v267
        %v290 = vunpack.c.h.bf16 %v267
        %v291 = vunpack.c.l.bf16 %v268
        %v292 = vunpack.c.h.bf16 %v268
        %v293 = vunpack.c.l.bf16 %v269
        %v294 = vunpack.c.h.bf16 %v269
        %v295 = vunpack.c.l.bf16 %v270
        %v296 = vunpack.c.h.bf16 %v270
        %v297 = vunpack.c.l.bf16 %v271
        %v298 = vunpack.c.h.bf16 %v271
        %v299 = vunpack.c.l.bf16 %v272
        %v300 = vunpack.c.h.bf16 %v272
        %v301 = vunpack.c.l.bf16 %v273
        %v302 = vunpack.c.h.bf16 %v273
        %v303 = vunpack.c.l.bf16 %v274
        %v304 = vunpack.c.h.bf16 %v274
        %v305 = vunpack.c.l.bf16 %v275
        %v306 = vunpack.c.h.bf16 %v275
        %v307 = vunpack.c.l.bf16 %v276
        %v308 = vunpack.c.h.bf16 %v276
        %v309 = vand.u32 2147483647, %v277
        %v310 = vand.u32 2147483647, %v278
        %v311 = vand.u32 2147483647, %v279
        %v312 = vand.u32 2147483647, %v280
        %v313 = vand.u32 2147483647, %v281
        %v314 = vand.u32 2147483647, %v282
        %v315 = vand.u32 2147483647, %v283
        %v316 = vand.u32 2147483647, %v284
        %v317 = vand.u32 2147483647, %v285
        %v318 = vand.u32 2147483647, %v286
        %v319 = vand.u32 2147483647, %v287
        %v320 = vand.u32 2147483647, %v288
        %v321 = vand.u32 2147483647, %v289
        %v322 = vand.u32 2147483647, %v290
        %v323 = vand.u32 2147483647, %v291
        %v324 = vand.u32 2147483647, %v292
        %v325 = vand.u32 2147483647, %v293
        %v326 = vand.u32 2147483647, %v294
        %v327 = vand.u32 2147483647, %v295
        %v328 = vand.u32 2147483647, %v296
        %v329 = vand.u32 2147483647, %v297
        %v330 = vand.u32 2147483647, %v298
        %v331 = vand.u32 2147483647, %v299
        %v332 = vand.u32 2147483647, %v300
        %v333 = vand.u32 2147483647, %v301
        %v334 = vand.u32 2147483647, %v302
        %v335 = vand.u32 2147483647, %v303
        %v336 = vand.u32 2147483647, %v304
        %v337 = vand.u32 2147483647, %v305
        %v338 = vand.u32 2147483647, %v306
        %v339 = vand.u32 2147483647, %v307
        %v340 = vand.u32 2147483647, %v308
        %v341 = vadd.f32 %v309, %v310
        %342 = vadd.xlane.f32.xlu0 %v341
        %v343 = vpop.xlane.xlu0 %342
        %v344 = vadd.f32 %v311, %v312
        %345 = vadd.xlane.f32.xlu0 %v344
        %v346 = vpop.xlane.xlu0 %345
        %v347 = vadd.f32 %v313, %v314
        %348 = vadd.xlane.f32.xlu0 %v347
        %v349 = vpop.xlane.xlu0 %348
        %v350 = vadd.f32 %v315, %v316
        %351 = vadd.xlane.f32.xlu0 %v350
        %v352 = vpop.xlane.xlu0 %351
        %v353 = vadd.f32 %v317, %v318
        %354 = vadd.xlane.f32.xlu0 %v353
        %v355 = vpop.xlane.xlu0 %354
        %v356 = vadd.f32 %v319, %v320
        %357 = vadd.xlane.f32.xlu0 %v356
        %v358 = vpop.xlane.xlu0 %357
        %v359 = vadd.f32 %v321, %v322
        %360 = vadd.xlane.f32.xlu0 %v359
        %v361 = vpop.xlane.xlu0 %360
        %v362 = vadd.f32 %v323, %v324
        %363 = vadd.xlane.f32.xlu0 %v362
        %v364 = vpop.xlane.xlu0 %363
        %v365 = vadd.f32 %v325, %v326
        %366 = vadd.xlane.f32.xlu0 %v365
        %v367 = vpop.xlane.xlu0 %366
        %v368 = vadd.f32 %v327, %v328
        %369 = vadd.xlane.f32.xlu0 %v368
        %v370 = vpop.xlane.xlu0 %369
        %v371 = vadd.f32 %v329, %v330
        %372 = vadd.xlane.f32.xlu0 %v371
        %v373 = vpop.xlane.xlu0 %372
        %v374 = vadd.f32 %v331, %v332
        %375 = vadd.xlane.f32.xlu0 %v374
        %v376 = vpop.xlane.xlu0 %375
        %v377 = vadd.f32 %v333, %v334
        %378 = vadd.xlane.f32.xlu0 %v377
        %v379 = vpop.xlane.xlu0 %378
        %v380 = vadd.f32 %v335, %v336
        %381 = vadd.xlane.f32.xlu0 %v380
        %v382 = vpop.xlane.xlu0 %381
        %v383 = vadd.f32 %v337, %v338
        %384 = vadd.xlane.f32.xlu0 %v383
        %v385 = vpop.xlane.xlu0 %384
        %v386 = vadd.f32 %v339, %v340
        %387 = vadd.xlane.f32.xlu0 %v386
        %v388 = vpop.xlane.xlu0 %387
        %v389 = vmax.f32 %v343, 1e-12
        %v390 = vmax.f32 %v346, 1e-12
        %v391 = vmax.f32 %v349, 1e-12
        %v392 = vmax.f32 %v352, 1e-12
        %v393 = vmax.f32 %v355, 1e-12
        %v394 = vmax.f32 %v358, 1e-12
        %v395 = vmax.f32 %v361, 1e-12
        %v396 = vmax.f32 %v364, 1e-12
        %v397 = vmax.f32 %v367, 1e-12
        %v398 = vmax.f32 %v370, 1e-12
        %v399 = vmax.f32 %v373, 1e-12
        %v400 = vmax.f32 %v376, 1e-12
        %v401 = vmax.f32 %v379, 1e-12
        %v402 = vmax.f32 %v382, 1e-12
        %v403 = vmax.f32 %v385, 1e-12
        %v404 = vmax.f32 %v388, 1e-12
        %v405 = vrcp.pop %v389
        %v406 = vmul.f32 %v389, %v405
        %v407 = vsub.f32 1.0, %v406
        %v408 = vmul.f32 %v405, %v407
        %v409 = vadd.f32 %v405, %v408
        %vm410 = vweird.f32 %v389
        %vm411 = vweird.f32 %v405
        %vm412 = vmor %vm410, %vm411
        %v413 = vsel %vm412, %v405, %v409
        %v414 = vand.u32 2147483647, %v389
        %vm415 = vcmp.eq.f32.partialorder %v414, 8.507059e+37
        %v416 = vand.u32 %v389, 2147483648
        %v417 = vor.u32 1.1754944e-38, %v416
        %v418 = vsel %vm415, %v417, %v413
        %v419 = vmul.f32 1.0, %v418
        %v420 = vrcp.pop %v390
        %v421 = vmul.f32 %v390, %v420
        %v422 = vsub.f32 1.0, %v421
        %v423 = vmul.f32 %v420, %v422
        %v424 = vadd.f32 %v420, %v423
        %vm425 = vweird.f32 %v390
        %vm426 = vweird.f32 %v420
        %vm427 = vmor %vm425, %vm426
        %v428 = vsel %vm427, %v420, %v424
        %v429 = vand.u32 2147483647, %v390
        %vm430 = vcmp.eq.f32.partialorder %v429, 8.507059e+37
        %v431 = vand.u32 %v390, 2147483648
        %v432 = vor.u32 1.1754944e-38, %v431
        %v433 = vsel %vm430, %v432, %v428
        %v434 = vmul.f32 1.0, %v433
        %v435 = vrcp.pop %v391
        %v436 = vmul.f32 %v391, %v435
        %v437 = vsub.f32 1.0, %v436
        %v438 = vmul.f32 %v435, %v437
        %v439 = vadd.f32 %v435, %v438
        %vm440 = vweird.f32 %v391
        %vm441 = vweird.f32 %v435
        %vm442 = vmor %vm440, %vm441
        %v443 = vsel %vm442, %v435, %v439
        %v444 = vand.u32 2147483647, %v391
        %vm445 = vcmp.eq.f32.partialorder %v444, 8.507059e+37
        %v446 = vand.u32 %v391, 2147483648
        %v447 = vor.u32 1.1754944e-38, %v446
        %v448 = vsel %vm445, %v447, %v443
        %v449 = vmul.f32 1.0, %v448
        %v450 = vrcp.pop %v392
        %v451 = vmul.f32 %v392, %v450
        %v452 = vsub.f32 1.0, %v451
        %v453 = vmul.f32 %v450, %v452
        %v454 = vadd.f32 %v450, %v453
        %vm455 = vweird.f32 %v392
        %vm456 = vweird.f32 %v450
        %vm457 = vmor %vm455, %vm456
        %v458 = vsel %vm457, %v450, %v454
        %v459 = vand.u32 2147483647, %v392
        %vm460 = vcmp.eq.f32.partialorder %v459, 8.507059e+37
        %v461 = vand.u32 %v392, 2147483648
        %v462 = vor.u32 1.1754944e-38, %v461
        %v463 = vsel %vm460, %v462, %v458
        %v464 = vmul.f32 1.0, %v463
        %v465 = vrcp.pop %v393
        %v466 = vmul.f32 %v393, %v465
        %v467 = vsub.f32 1.0, %v466
        %v468 = vmul.f32 %v465, %v467
        %v469 = vadd.f32 %v465, %v468
        %vm470 = vweird.f32 %v393
        %vm471 = vweird.f32 %v465
        %vm472 = vmor %vm470, %vm471
        %v473 = vsel %vm472, %v465, %v469
        %v474 = vand.u32 2147483647, %v393
        %vm475 = vcmp.eq.f32.partialorder %v474, 8.507059e+37
        %v476 = vand.u32 %v393, 2147483648
        %v477 = vor.u32 1.1754944e-38, %v476
        %v478 = vsel %vm475, %v477, %v473
        %v479 = vmul.f32 1.0, %v478
        %v480 = vrcp.pop %v394
        %v481 = vmul.f32 %v394, %v480
        %v482 = vsub.f32 1.0, %v481
        %v483 = vmul.f32 %v480, %v482
        %v484 = vadd.f32 %v480, %v483
        %vm485 = vweird.f32 %v394
        %vm486 = vweird.f32 %v480
        %vm487 = vmor %vm485, %vm486
        %v488 = vsel %vm487, %v480, %v484
        %v489 = vand.u32 2147483647, %v394
        %vm490 = vcmp.eq.f32.partialorder %v489, 8.507059e+37
        %v491 = vand.u32 %v394, 2147483648
        %v492 = vor.u32 1.1754944e-38, %v491
        %v493 = vsel %vm490, %v492, %v488
        %v494 = vmul.f32 1.0, %v493
        %v495 = vrcp.pop %v395
        %v496 = vmul.f32 %v395, %v495
        %v497 = vsub.f32 1.0, %v496
        %v498 = vmul.f32 %v495, %v497
        %v499 = vadd.f32 %v495, %v498
        %vm500 = vweird.f32 %v395
        %vm501 = vweird.f32 %v495
        %vm502 = vmor %vm500, %vm501
        %v503 = vsel %vm502, %v495, %v499
        %v504 = vand.u32 2147483647, %v395
        %vm505 = vcmp.eq.f32.partialorder %v504, 8.507059e+37
        %v506 = vand.u32 %v395, 2147483648
        %v507 = vor.u32 1.1754944e-38, %v506
        %v508 = vsel %vm505, %v507, %v503
        %v509 = vmul.f32 1.0, %v508
        %v510 = vrcp.pop %v396
        %v511 = vmul.f32 %v396, %v510
        %v512 = vsub.f32 1.0, %v511
        %v513 = vmul.f32 %v510, %v512
        %v514 = vadd.f32 %v510, %v513
        %vm515 = vweird.f32 %v396
        %vm516 = vweird.f32 %v510
        %vm517 = vmor %vm515, %vm516
        %v518 = vsel %vm517, %v510, %v514
        %v519 = vand.u32 2147483647, %v396
        %vm520 = vcmp.eq.f32.partialorder %v519, 8.507059e+37
        %v521 = vand.u32 %v396, 2147483648
        %v522 = vor.u32 1.1754944e-38, %v521
        %v523 = vsel %vm520, %v522, %v518
        %v524 = vmul.f32 1.0, %v523
        %v525 = vrcp.pop %v397
        %v526 = vmul.f32 %v397, %v525
        %v527 = vsub.f32 1.0, %v526
        %v528 = vmul.f32 %v525, %v527
        %v529 = vadd.f32 %v525, %v528
        %vm530 = vweird.f32 %v397
        %vm531 = vweird.f32 %v525
        %vm532 = vmor %vm530, %vm531
        %v533 = vsel %vm532, %v525, %v529
        %v534 = vand.u32 2147483647, %v397
        %vm535 = vcmp.eq.f32.partialorder %v534, 8.507059e+37
        %v536 = vand.u32 %v397, 2147483648
        %v537 = vor.u32 1.1754944e-38, %v536
        %v538 = vsel %vm535, %v537, %v533
        %v539 = vmul.f32 1.0, %v538
        %v540 = vrcp.pop %v398
        %v541 = vmul.f32 %v398, %v540
        %v542 = vsub.f32 1.0, %v541
        %v543 = vmul.f32 %v540, %v542
        %v544 = vadd.f32 %v540, %v543
        %vm545 = vweird.f32 %v398
        %vm546 = vweird.f32 %v540
        %vm547 = vmor %vm545, %vm546
        %v548 = vsel %vm547, %v540, %v544
        %v549 = vand.u32 2147483647, %v398
        %vm550 = vcmp.eq.f32.partialorder %v549, 8.507059e+37
        %v551 = vand.u32 %v398, 2147483648
        %v552 = vor.u32 1.1754944e-38, %v551
        %v553 = vsel %vm550, %v552, %v548
        %v554 = vmul.f32 1.0, %v553
        %v555 = vrcp.pop %v399
        %v556 = vmul.f32 %v399, %v555
        %v557 = vsub.f32 1.0, %v556
        %v558 = vmul.f32 %v555, %v557
        %v559 = vadd.f32 %v555, %v558
        %vm560 = vweird.f32 %v399
        %vm561 = vweird.f32 %v555
        %vm562 = vmor %vm560, %vm561
        %v563 = vsel %vm562, %v555, %v559
        %v564 = vand.u32 2147483647, %v399
        %vm565 = vcmp.eq.f32.partialorder %v564, 8.507059e+37
        %v566 = vand.u32 %v399, 2147483648
        %v567 = vor.u32 1.1754944e-38, %v566
        %v568 = vsel %vm565, %v567, %v563
        %v569 = vmul.f32 1.0, %v568
        %v570 = vrcp.pop %v400
        %v571 = vmul.f32 %v400, %v570
        %v572 = vsub.f32 1.0, %v571
        %v573 = vmul.f32 %v570, %v572
        %v574 = vadd.f32 %v570, %v573
        %vm575 = vweird.f32 %v400
        %vm576 = vweird.f32 %v570
        %vm577 = vmor %vm575, %vm576
        %v578 = vsel %vm577, %v570, %v574
        %v579 = vand.u32 2147483647, %v400
        %vm580 = vcmp.eq.f32.partialorder %v579, 8.507059e+37
        %v581 = vand.u32 %v400, 2147483648
        %v582 = vor.u32 1.1754944e-38, %v581
        %v583 = vsel %vm580, %v582, %v578
        %v584 = vmul.f32 1.0, %v583
        %v585 = vrcp.pop %v401
        %v586 = vmul.f32 %v401, %v585
        %v587 = vsub.f32 1.0, %v586
        %v588 = vmul.f32 %v585, %v587
        %v589 = vadd.f32 %v585, %v588
        %vm590 = vweird.f32 %v401
        %vm591 = vweird.f32 %v585
        %vm592 = vmor %vm590, %vm591
        %v593 = vsel %vm592, %v585, %v589
        %v594 = vand.u32 2147483647, %v401
        %vm595 = vcmp.eq.f32.partialorder %v594, 8.507059e+37
        %v596 = vand.u32 %v401, 2147483648
        %v597 = vor.u32 1.1754944e-38, %v596
        %v598 = vsel %vm595, %v597, %v593
        %v599 = vmul.f32 1.0, %v598
        %v600 = vrcp.pop %v402
        %v601 = vmul.f32 %v402, %v600
        %v602 = vsub.f32 1.0, %v601
        %v603 = vmul.f32 %v600, %v602
        %v604 = vadd.f32 %v600, %v603
        %vm605 = vweird.f32 %v402
        %vm606 = vweird.f32 %v600
        %vm607 = vmor %vm605, %vm606
        %v608 = vsel %vm607, %v600, %v604
        %v609 = vand.u32 2147483647, %v402
        %vm610 = vcmp.eq.f32.partialorder %v609, 8.507059e+37
        %v611 = vand.u32 %v402, 2147483648
        %v612 = vor.u32 1.1754944e-38, %v611
        %v613 = vsel %vm610, %v612, %v608
        %v614 = vmul.f32 1.0, %v613
        %v615 = vrcp.pop %v403
        %v616 = vmul.f32 %v403, %v615
        %v617 = vsub.f32 1.0, %v616
        %v618 = vmul.f32 %v615, %v617
        %v619 = vadd.f32 %v615, %v618
        %vm620 = vweird.f32 %v403
        %vm621 = vweird.f32 %v615
        %vm622 = vmor %vm620, %vm621
        %v623 = vsel %vm622, %v615, %v619
        %v624 = vand.u32 2147483647, %v403
        %vm625 = vcmp.eq.f32.partialorder %v624, 8.507059e+37
        %v626 = vand.u32 %v403, 2147483648
        %v627 = vor.u32 1.1754944e-38, %v626
        %v628 = vsel %vm625, %v627, %v623
        %v629 = vmul.f32 1.0, %v628
        %v630 = vrcp.pop %v404
        %v631 = vmul.f32 %v404, %v630
        %v632 = vsub.f32 1.0, %v631
        %v633 = vmul.f32 %v630, %v632
        %v634 = vadd.f32 %v630, %v633
        %vm635 = vweird.f32 %v404
        %vm636 = vweird.f32 %v630
        %vm637 = vmor %vm635, %vm636
        %v638 = vsel %vm637, %v630, %v634
        %v639 = vand.u32 2147483647, %v404
        %vm640 = vcmp.eq.f32.partialorder %v639, 8.507059e+37
        %v641 = vand.u32 %v404, 2147483648
        %v642 = vor.u32 1.1754944e-38, %v641
        %v643 = vsel %vm640, %v642, %v638
        %v644 = vmul.f32 1.0, %v643
        %v645 = vmul.f32 %v229, %v229
        %v646 = vmul.f32 %v230, %v230
        %v647 = vmul.f32 %v231, %v231
        %v648 = vmul.f32 %v232, %v232
        %v649 = vmul.f32 %v233, %v233
        %v650 = vmul.f32 %v234, %v234
        %v651 = vmul.f32 %v235, %v235
        %v652 = vmul.f32 %v236, %v236
        %v653 = vmul.f32 %v237, %v237
        %v654 = vmul.f32 %v238, %v238
        %v655 = vmul.f32 %v239, %v239
        %v656 = vmul.f32 %v240, %v240
        %v657 = vmul.f32 %v241, %v241
        %v658 = vmul.f32 %v242, %v242
        %v659 = vmul.f32 %v243, %v243
        %v660 = vmul.f32 %v244, %v244
        %v661 = vmul.f32 %v245, %v245
        %v662 = vmul.f32 %v246, %v246
        %v663 = vmul.f32 %v247, %v247
        %v664 = vmul.f32 %v248, %v248
        %v665 = vmul.f32 %v249, %v249
        %v666 = vmul.f32 %v250, %v250
        %v667 = vmul.f32 %v251, %v251
        %v668 = vmul.f32 %v252, %v252
        %v669 = vmul.f32 %v253, %v253
        %v670 = vmul.f32 %v254, %v254
        %v671 = vmul.f32 %v255, %v255
        %v672 = vmul.f32 %v256, %v256
        %v673 = vmul.f32 %v257, %v257
        %v674 = vmul.f32 %v258, %v258
        %v675 = vmul.f32 %v259, %v259
        %v676 = vmul.f32 %v260, %v260
        %v677 = vmul.f32 %v645, %v277
        %v678 = vmul.f32 %v646, %v278
        %v679 = vmul.f32 %v647, %v279
        %v680 = vmul.f32 %v648, %v280
        %v681 = vmul.f32 %v649, %v281
        %v682 = vmul.f32 %v650, %v282
        %v683 = vmul.f32 %v651, %v283
        %v684 = vmul.f32 %v652, %v284
        %v685 = vmul.f32 %v653, %v285
        %v686 = vmul.f32 %v654, %v286
        %v687 = vmul.f32 %v655, %v287
        %v688 = vmul.f32 %v656, %v288
        %v689 = vmul.f32 %v657, %v289
        %v690 = vmul.f32 %v658, %v290
        %v691 = vmul.f32 %v659, %v291
        %v692 = vmul.f32 %v660, %v292
        %v693 = vmul.f32 %v661, %v293
        %v694 = vmul.f32 %v662, %v294
        %v695 = vmul.f32 %v663, %v295
        %v696 = vmul.f32 %v664, %v296
        %v697 = vmul.f32 %v665, %v297
        %v698 = vmul.f32 %v666, %v298
        %v699 = vmul.f32 %v667, %v299
        %v700 = vmul.f32 %v668, %v300
        %v701 = vmul.f32 %v669, %v301
        %v702 = vmul.f32 %v670, %v302
        %v703 = vmul.f32 %v671, %v303
        %v704 = vmul.f32 %v672, %v304
        %v705 = vmul.f32 %v673, %v305
        %v706 = vmul.f32 %v674, %v306
        %v707 = vmul.f32 %v675, %v307
        %v708 = vmul.f32 %v676, %v308
        %v709 = vadd.f32 %v677, %v678
        %710 = vadd.xlane.f32.xlu0 %v709
        %v711 = vpop.xlane.xlu0 %710
        %v712 = vadd.f32 %v679, %v680
        %713 = vadd.xlane.f32.xlu0 %v712
        %v714 = vpop.xlane.xlu0 %713
        %v715 = vadd.f32 %v681, %v682
        %716 = vadd.xlane.f32.xlu0 %v715
        %v717 = vpop.xlane.xlu0 %716
        %v718 = vadd.f32 %v683, %v684
        %719 = vadd.xlane.f32.xlu0 %v718
        %v720 = vpop.xlane.xlu0 %719
        %v721 = vadd.f32 %v685, %v686
        %722 = vadd.xlane.f32.xlu0 %v721
        %v723 = vpop.xlane.xlu0 %722
        %v724 = vadd.f32 %v687, %v688
        %725 = vadd.xlane.f32.xlu0 %v724
        %v726 = vpop.xlane.xlu0 %725
        %v727 = vadd.f32 %v689, %v690
        %728 = vadd.xlane.f32.xlu0 %v727
        %v729 = vpop.xlane.xlu0 %728
        %v730 = vadd.f32 %v691, %v692
        %731 = vadd.xlane.f32.xlu0 %v730
        %v732 = vpop.xlane.xlu0 %731
        %v733 = vadd.f32 %v693, %v694
        %734 = vadd.xlane.f32.xlu0 %v733
        %v735 = vpop.xlane.xlu0 %734
        %v736 = vadd.f32 %v695, %v696
        %737 = vadd.xlane.f32.xlu0 %v736
        %v738 = vpop.xlane.xlu0 %737
        %v739 = vadd.f32 %v697, %v698
        %740 = vadd.xlane.f32.xlu0 %v739
        %v741 = vpop.xlane.xlu0 %740
        %v742 = vadd.f32 %v699, %v700
        %743 = vadd.xlane.f32.xlu0 %v742
        %v744 = vpop.xlane.xlu0 %743
        %v745 = vadd.f32 %v701, %v702
        %746 = vadd.xlane.f32.xlu0 %v745
        %v747 = vpop.xlane.xlu0 %746
        %v748 = vadd.f32 %v703, %v704
        %749 = vadd.xlane.f32.xlu0 %v748
        %v750 = vpop.xlane.xlu0 %749
        %v751 = vadd.f32 %v705, %v706
        %752 = vadd.xlane.f32.xlu0 %v751
        %v753 = vpop.xlane.xlu0 %752
        %v754 = vadd.f32 %v707, %v708
        %755 = vadd.xlane.f32.xlu0 %v754
        %v756 = vpop.xlane.xlu0 %755
        %v757 = vsub.f32 %v229, 1.0
        %v758 = vsub.f32 %v230, 1.0
        %v759 = vsub.f32 %v231, 1.0
        %v760 = vsub.f32 %v232, 1.0
        %v761 = vsub.f32 %v233, 1.0
        %v762 = vsub.f32 %v234, 1.0
        %v763 = vsub.f32 %v235, 1.0
        %v764 = vsub.f32 %v236, 1.0
        %v765 = vsub.f32 %v237, 1.0
        %v766 = vsub.f32 %v238, 1.0
        %v767 = vsub.f32 %v239, 1.0
        %v768 = vsub.f32 %v240, 1.0
        %v769 = vsub.f32 %v241, 1.0
        %v770 = vsub.f32 %v242, 1.0
        %v771 = vsub.f32 %v243, 1.0
        %v772 = vsub.f32 %v244, 1.0
        %v773 = vsub.f32 %v245, 1.0
        %v774 = vsub.f32 %v246, 1.0
        %v775 = vsub.f32 %v247, 1.0
        %v776 = vsub.f32 %v248, 1.0
        %v777 = vsub.f32 %v249, 1.0
        %v778 = vsub.f32 %v250, 1.0
        %v779 = vsub.f32 %v251, 1.0
        %v780 = vsub.f32 %v252, 1.0
        %v781 = vsub.f32 %v253, 1.0
        %v782 = vsub.f32 %v254, 1.0
        %v783 = vsub.f32 %v255, 1.0
        %v784 = vsub.f32 %v256, 1.0
        %v785 = vsub.f32 %v257, 1.0
        %v786 = vsub.f32 %v258, 1.0
        %v787 = vsub.f32 %v259, 1.0
        %v788 = vsub.f32 %v260, 1.0
        %v789 = vmul.f32 %v757, %v757
        %v790 = vmul.f32 %v758, %v758
        %v791 = vmul.f32 %v759, %v759
        %v792 = vmul.f32 %v760, %v760
        %v793 = vmul.f32 %v761, %v761
        %v794 = vmul.f32 %v762, %v762
        %v795 = vmul.f32 %v763, %v763
        %v796 = vmul.f32 %v764, %v764
        %v797 = vmul.f32 %v765, %v765
        %v798 = vmul.f32 %v766, %v766
        %v799 = vmul.f32 %v767, %v767
        %v800 = vmul.f32 %v768, %v768
        %v801 = vmul.f32 %v769, %v769
        %v802 = vmul.f32 %v770, %v770
        %v803 = vmul.f32 %v771, %v771
        %v804 = vmul.f32 %v772, %v772
        %v805 = vmul.f32 %v773, %v773
        %v806 = vmul.f32 %v774, %v774
        %v807 = vmul.f32 %v775, %v775
        %v808 = vmul.f32 %v776, %v776
        %v809 = vmul.f32 %v777, %v777
        %v810 = vmul.f32 %v778, %v778
        %v811 = vmul.f32 %v779, %v779
        %v812 = vmul.f32 %v780, %v780
        %v813 = vmul.f32 %v781, %v781
        %v814 = vmul.f32 %v782, %v782
        %v815 = vmul.f32 %v783, %v783
        %v816 = vmul.f32 %v784, %v784
        %v817 = vmul.f32 %v785, %v785
        %v818 = vmul.f32 %v786, %v786
        %v819 = vmul.f32 %v787, %v787
        %v820 = vmul.f32 %v788, %v788
        %v821 = vmul.f32 %v789, %v277
        %v822 = vmul.f32 %v790, %v278
        %v823 = vmul.f32 %v791, %v279
        %v824 = vmul.f32 %v792, %v280
        %v825 = vmul.f32 %v793, %v281
        %v826 = vmul.f32 %v794, %v282
        %v827 = vmul.f32 %v795, %v283
        %v828 = vmul.f32 %v796, %v284
        %v829 = vmul.f32 %v797, %v285
        %v830 = vmul.f32 %v798, %v286
        %v831 = vmul.f32 %v799, %v287
        %v832 = vmul.f32 %v800, %v288
        %v833 = vmul.f32 %v801, %v289
        %v834 = vmul.f32 %v802, %v290
        %v835 = vmul.f32 %v803, %v291
        %v836 = vmul.f32 %v804, %v292
        %v837 = vmul.f32 %v805, %v293
        %v838 = vmul.f32 %v806, %v294
        %v839 = vmul.f32 %v807, %v295
        %v840 = vmul.f32 %v808, %v296
        %v841 = vmul.f32 %v809, %v297
        %v842 = vmul.f32 %v810, %v298
        %v843 = vmul.f32 %v811, %v299
        %v844 = vmul.f32 %v812, %v300
        %v845 = vmul.f32 %v813, %v301
        %v846 = vmul.f32 %v814, %v302
        %v847 = vmul.f32 %v815, %v303
        %v848 = vmul.f32 %v816, %v304
        %v849 = vmul.f32 %v817, %v305
        %v850 = vmul.f32 %v818, %v306
        %v851 = vmul.f32 %v819, %v307
        %v852 = vmul.f32 %v820, %v308
        %v853 = vadd.f32 %v821, %v822
        %854 = vadd.xlane.f32.xlu0 %v853
        %v855 = vpop.xlane.xlu0 %854
        %v856 = vadd.f32 %v823, %v824
        %857 = vadd.xlane.f32.xlu0 %v856
        %v858 = vpop.xlane.xlu0 %857
        %v859 = vadd.f32 %v825, %v826
        %860 = vadd.xlane.f32.xlu0 %v859
        %v861 = vpop.xlane.xlu0 %860
        %v862 = vadd.f32 %v827, %v828
        %863 = vadd.xlane.f32.xlu0 %v862
        %v864 = vpop.xlane.xlu0 %863
        %v865 = vadd.f32 %v829, %v830
        %866 = vadd.xlane.f32.xlu0 %v865
        %v867 = vpop.xlane.xlu0 %866
        %v868 = vadd.f32 %v831, %v832
        %869 = vadd.xlane.f32.xlu0 %v868
        %v870 = vpop.xlane.xlu0 %869
        %v871 = vadd.f32 %v833, %v834
        %872 = vadd.xlane.f32.xlu0 %v871
        %v873 = vpop.xlane.xlu0 %872
        %v874 = vadd.f32 %v835, %v836
        %875 = vadd.xlane.f32.xlu0 %v874
        %v876 = vpop.xlane.xlu0 %875
        %v877 = vadd.f32 %v837, %v838
        %878 = vadd.xlane.f32.xlu0 %v877
        %v879 = vpop.xlane.xlu0 %878
        %v880 = vadd.f32 %v839, %v840
        %881 = vadd.xlane.f32.xlu0 %v880
        %v882 = vpop.xlane.xlu0 %881
        %v883 = vadd.f32 %v841, %v842
        %884 = vadd.xlane.f32.xlu0 %v883
        %v885 = vpop.xlane.xlu0 %884
        %v886 = vadd.f32 %v843, %v844
        %887 = vadd.xlane.f32.xlu0 %v886
        %v888 = vpop.xlane.xlu0 %887
        %v889 = vadd.f32 %v845, %v846
        %890 = vadd.xlane.f32.xlu0 %v889
        %v891 = vpop.xlane.xlu0 %890
        %v892 = vadd.f32 %v847, %v848
        %893 = vadd.xlane.f32.xlu0 %v892
        %v894 = vpop.xlane.xlu0 %893
        %v895 = vadd.f32 %v849, %v850
        %896 = vadd.xlane.f32.xlu0 %v895
        %v897 = vpop.xlane.xlu0 %896
        %v898 = vadd.f32 %v851, %v852
        %899 = vadd.xlane.f32.xlu0 %v898
        %v900 = vpop.xlane.xlu0 %899
        %v901 = vmul.f32 %v711, %v419
        %v902 = vmul.f32 %v714, %v434
        %v903 = vmul.f32 %v717, %v449
        %v904 = vmul.f32 %v720, %v464
        %v905 = vmul.f32 %v723, %v479
        %v906 = vmul.f32 %v726, %v494
        %v907 = vmul.f32 %v729, %v509
        %v908 = vmul.f32 %v732, %v524
        %v909 = vmul.f32 %v735, %v539
        %v910 = vmul.f32 %v738, %v554
        %v911 = vmul.f32 %v741, %v569
        %v912 = vmul.f32 %v744, %v584
        %v913 = vmul.f32 %v747, %v599
        %v914 = vmul.f32 %v750, %v614
        %v915 = vmul.f32 %v753, %v629
        %v916 = vmul.f32 %v756, %v644
        %v917 = vrsqrt.pop %v901
        %v918 = vmul.f32 %v917, %v901
        %v919 = vmul.f32 %v918, %v917
        %v920 = vmul.f32 0.5, %v919
        %v921 = vsub.f32 1.5, %v920
        %v922 = vmul.f32 %v917, %v921
        %v923 = vmul.f32 %v901, %v922
        %vm924 = vcmp.eq.f32.partialorder %v901, inf
        %v925 = vsel %vm924, %v901, %v923
        %vm926 = vcmp.eq.f32.partialorder %v901, 0.0
        %v927 = vand.u32 %v901, 2147483648
        %v928 = vsel %vm926, %v927, %v925
        %v929 = vrsqrt.pop %v902
        %v930 = vmul.f32 %v929, %v902
        %v931 = vmul.f32 %v930, %v929
        %v932 = vmul.f32 0.5, %v931
        %v933 = vsub.f32 1.5, %v932
        %v934 = vmul.f32 %v929, %v933
        %v935 = vmul.f32 %v902, %v934
        %vm936 = vcmp.eq.f32.partialorder %v902, inf
        %v937 = vsel %vm936, %v902, %v935
        %vm938 = vcmp.eq.f32.partialorder %v902, 0.0
        %v939 = vand.u32 %v902, 2147483648
        %v940 = vsel %vm938, %v939, %v937
        %v941 = vrsqrt.pop %v903
        %v942 = vmul.f32 %v941, %v903
        %v943 = vmul.f32 %v942, %v941
        %v944 = vmul.f32 0.5, %v943
        %v945 = vsub.f32 1.5, %v944
        %v946 = vmul.f32 %v941, %v945
        %v947 = vmul.f32 %v903, %v946
        %vm948 = vcmp.eq.f32.partialorder %v903, inf
        %v949 = vsel %vm948, %v903, %v947
        %vm950 = vcmp.eq.f32.partialorder %v903, 0.0
        %v951 = vand.u32 %v903, 2147483648
        %v952 = vsel %vm950, %v951, %v949
        %v953 = vrsqrt.pop %v904
        %v954 = vmul.f32 %v953, %v904
        %v955 = vmul.f32 %v954, %v953
        %v956 = vmul.f32 0.5, %v955
        %v957 = vsub.f32 1.5, %v956
        %v958 = vmul.f32 %v953, %v957
        %v959 = vmul.f32 %v904, %v958
        %vm960 = vcmp.eq.f32.partialorder %v904, inf
        %v961 = vsel %vm960, %v904, %v959
        %vm962 = vcmp.eq.f32.partialorder %v904, 0.0
        %v963 = vand.u32 %v904, 2147483648
        %v964 = vsel %vm962, %v963, %v961
        %v965 = vrsqrt.pop %v905
        %v966 = vmul.f32 %v965, %v905
        %v967 = vmul.f32 %v966, %v965
        %v968 = vmul.f32 0.5, %v967
        %v969 = vsub.f32 1.5, %v968
        %v970 = vmul.f32 %v965, %v969
        %v971 = vmul.f32 %v905, %v970
        %vm972 = vcmp.eq.f32.partialorder %v905, inf
        %v973 = vsel %vm972, %v905, %v971
        %vm974 = vcmp.eq.f32.partialorder %v905, 0.0
        %v975 = vand.u32 %v905, 2147483648
        %v976 = vsel %vm974, %v975, %v973
        %v977 = vrsqrt.pop %v906
        %v978 = vmul.f32 %v977, %v906
        %v979 = vmul.f32 %v978, %v977
        %v980 = vmul.f32 0.5, %v979
        %v981 = vsub.f32 1.5, %v980
        %v982 = vmul.f32 %v977, %v981
        %v983 = vmul.f32 %v906, %v982
        %vm984 = vcmp.eq.f32.partialorder %v906, inf
        %v985 = vsel %vm984, %v906, %v983
        %vm986 = vcmp.eq.f32.partialorder %v906, 0.0
        %v987 = vand.u32 %v906, 2147483648
        %v988 = vsel %vm986, %v987, %v985
        %v989 = vrsqrt.pop %v907
        %v990 = vmul.f32 %v989, %v907
        %v991 = vmul.f32 %v990, %v989
        %v992 = vmul.f32 0.5, %v991
        %v993 = vsub.f32 1.5, %v992
        %v994 = vmul.f32 %v989, %v993
        %v995 = vmul.f32 %v907, %v994
        %vm996 = vcmp.eq.f32.partialorder %v907, inf
        %v997 = vsel %vm996, %v907, %v995
        %vm998 = vcmp.eq.f32.partialorder %v907, 0.0
        %v999 = vand.u32 %v907, 2147483648
        %v1000 = vsel %vm998, %v999, %v997
        %v1001 = vrsqrt.pop %v908
        %v1002 = vmul.f32 %v1001, %v908
        %v1003 = vmul.f32 %v1002, %v1001
        %v1004 = vmul.f32 0.5, %v1003
        %v1005 = vsub.f32 1.5, %v1004
        %v1006 = vmul.f32 %v1001, %v1005
        %v1007 = vmul.f32 %v908, %v1006
        %vm1008 = vcmp.eq.f32.partialorder %v908, inf
        %v1009 = vsel %vm1008, %v908, %v1007
        %vm1010 = vcmp.eq.f32.partialorder %v908, 0.0
        %v1011 = vand.u32 %v908, 2147483648
        %v1012 = vsel %vm1010, %v1011, %v1009
        %v1013 = vrsqrt.pop %v909
        %v1014 = vmul.f32 %v1013, %v909
        %v1015 = vmul.f32 %v1014, %v1013
        %v1016 = vmul.f32 0.5, %v1015
        %v1017 = vsub.f32 1.5, %v1016
        %v1018 = vmul.f32 %v1013, %v1017
        %v1019 = vmul.f32 %v909, %v1018
        %vm1020 = vcmp.eq.f32.partialorder %v909, inf
        %v1021 = vsel %vm1020, %v909, %v1019
        %vm1022 = vcmp.eq.f32.partialorder %v909, 0.0
        %v1023 = vand.u32 %v909, 2147483648
        %v1024 = vsel %vm1022, %v1023, %v1021
        %v1025 = vrsqrt.pop %v910
        %v1026 = vmul.f32 %v1025, %v910
        %v1027 = vmul.f32 %v1026, %v1025
        %v1028 = vmul.f32 0.5, %v1027
        %v1029 = vsub.f32 1.5, %v1028
        %v1030 = vmul.f32 %v1025, %v1029
        %v1031 = vmul.f32 %v910, %v1030
        %vm1032 = vcmp.eq.f32.partialorder %v910, inf
        %v1033 = vsel %vm1032, %v910, %v1031
        %vm1034 = vcmp.eq.f32.partialorder %v910, 0.0
        %v1035 = vand.u32 %v910, 2147483648
        %v1036 = vsel %vm1034, %v1035, %v1033
        %v1037 = vrsqrt.pop %v911
        %v1038 = vmul.f32 %v1037, %v911
        %v1039 = vmul.f32 %v1038, %v1037
        %v1040 = vmul.f32 0.5, %v1039
        %v1041 = vsub.f32 1.5, %v1040
        %v1042 = vmul.f32 %v1037, %v1041
        %v1043 = vmul.f32 %v911, %v1042
        %vm1044 = vcmp.eq.f32.partialorder %v911, inf
        %v1045 = vsel %vm1044, %v911, %v1043
        %vm1046 = vcmp.eq.f32.partialorder %v911, 0.0
        %v1047 = vand.u32 %v911, 2147483648
        %v1048 = vsel %vm1046, %v1047, %v1045
        %v1049 = vrsqrt.pop %v912
        %v1050 = vmul.f32 %v1049, %v912
        %v1051 = vmul.f32 %v1050, %v1049
        %v1052 = vmul.f32 0.5, %v1051
        %v1053 = vsub.f32 1.5, %v1052
        %v1054 = vmul.f32 %v1049, %v1053
        %v1055 = vmul.f32 %v912, %v1054
        %vm1056 = vcmp.eq.f32.partialorder %v912, inf
        %v1057 = vsel %vm1056, %v912, %v1055
        %vm1058 = vcmp.eq.f32.partialorder %v912, 0.0
        %v1059 = vand.u32 %v912, 2147483648
        %v1060 = vsel %vm1058, %v1059, %v1057
        %v1061 = vrsqrt.pop %v913
        %v1062 = vmul.f32 %v1061, %v913
        %v1063 = vmul.f32 %v1062, %v1061
        %v1064 = vmul.f32 0.5, %v1063
        %v1065 = vsub.f32 1.5, %v1064
        %v1066 = vmul.f32 %v1061, %v1065
        %v1067 = vmul.f32 %v913, %v1066
        %vm1068 = vcmp.eq.f32.partialorder %v913, inf
        %v1069 = vsel %vm1068, %v913, %v1067
        %vm1070 = vcmp.eq.f32.partialorder %v913, 0.0
        %v1071 = vand.u32 %v913, 2147483648
        %v1072 = vsel %vm1070, %v1071, %v1069
        %v1073 = vrsqrt.pop %v914
        %v1074 = vmul.f32 %v1073, %v914
        %v1075 = vmul.f32 %v1074, %v1073
        %v1076 = vmul.f32 0.5, %v1075
        %v1077 = vsub.f32 1.5, %v1076
        %v1078 = vmul.f32 %v1073, %v1077
        %v1079 = vmul.f32 %v914, %v1078
        %vm1080 = vcmp.eq.f32.partialorder %v914, inf
        %v1081 = vsel %vm1080, %v914, %v1079
        %vm1082 = vcmp.eq.f32.partialorder %v914, 0.0
        %v1083 = vand.u32 %v914, 2147483648
        %v1084 = vsel %vm1082, %v1083, %v1081
        %v1085 = vrsqrt.pop %v915
        %v1086 = vmul.f32 %v1085, %v915
        %v1087 = vmul.f32 %v1086, %v1085
        %v1088 = vmul.f32 0.5, %v1087
        %v1089 = vsub.f32 1.5, %v1088
        %v1090 = vmul.f32 %v1085, %v1089
        %v1091 = vmul.f32 %v915, %v1090
        %vm1092 = vcmp.eq.f32.partialorder %v915, inf
        %v1093 = vsel %vm1092, %v915, %v1091
        %vm1094 = vcmp.eq.f32.partialorder %v915, 0.0
        %v1095 = vand.u32 %v915, 2147483648
        %v1096 = vsel %vm1094, %v1095, %v1093
        %v1097 = vrsqrt.pop %v916
        %v1098 = vmul.f32 %v1097, %v916
        %v1099 = vmul.f32 %v1098, %v1097
        %v1100 = vmul.f32 0.5, %v1099
        %v1101 = vsub.f32 1.5, %v1100
        %v1102 = vmul.f32 %v1097, %v1101
        %v1103 = vmul.f32 %v916, %v1102
        %vm1104 = vcmp.eq.f32.partialorder %v916, inf
        %v1105 = vsel %vm1104, %v916, %v1103
        %vm1106 = vcmp.eq.f32.partialorder %v916, 0.0
        %v1107 = vand.u32 %v916, 2147483648
        %v1108 = vsel %vm1106, %v1107, %v1105
        %vm1109 = vcmask 7168
        %1110 = vst.msk [vmem:[%s211] sm:$0xff] %vm1109, %v928
        %1111 = vst.msk [vmem:[%s211 + $0x8] sm:$0xff] %vm1109, %v940
        %1112 = vst.msk [vmem:[%s211 + $0x10] sm:$0xff] %vm1109, %v952
        %1113 = vst.msk [vmem:[%s211 + $0x18] sm:$0xff] %vm1109, %v964
        %1114 = vst.msk [vmem:[%s211 + $0x20] sm:$0xff] %vm1109, %v976
        %1115 = vst.msk [vmem:[%s211 + $0x28] sm:$0xff] %vm1109, %v988
        %1116 = vst.msk [vmem:[%s211 + $0x30] sm:$0xff] %vm1109, %v1000
        %1117 = vst.msk [vmem:[%s211 + $0x38] sm:$0xff] %vm1109, %v1012
        %1118 = vst.msk [vmem:[%s211 + $0x40] sm:$0xff] %vm1109, %v1024
        %1119 = vst.msk [vmem:[%s211 + $0x48] sm:$0xff] %vm1109, %v1036
        %1120 = vst.msk [vmem:[%s211 + $0x50] sm:$0xff] %vm1109, %v1048
        %1121 = vst.msk [vmem:[%s211 + $0x58] sm:$0xff] %vm1109, %v1060
        %1122 = vst.msk [vmem:[%s211 + $0x60] sm:$0xff] %vm1109, %v1072
        %1123 = vst.msk [vmem:[%s211 + $0x68] sm:$0xff] %vm1109, %v1084
        %1124 = vst.msk [vmem:[%s211 + $0x70] sm:$0xff] %vm1109, %v1096
        %1125 = vst.msk [vmem:[%s211 + $0x78] sm:$0xff] %vm1109, %v1108
        %v1126 = vmul.f32 %v855, %v419
        %v1127 = vmul.f32 %v858, %v434
        %v1128 = vmul.f32 %v861, %v449
        %v1129 = vmul.f32 %v864, %v464
        %v1130 = vmul.f32 %v867, %v479
        %v1131 = vmul.f32 %v870, %v494
        %v1132 = vmul.f32 %v873, %v509
        %v1133 = vmul.f32 %v876, %v524
        %v1134 = vmul.f32 %v879, %v539
        %v1135 = vmul.f32 %v882, %v554
        %v1136 = vmul.f32 %v885, %v569
        %v1137 = vmul.f32 %v888, %v584
        %v1138 = vmul.f32 %v891, %v599
        %v1139 = vmul.f32 %v894, %v614
        %v1140 = vmul.f32 %v897, %v629
        %v1141 = vmul.f32 %v900, %v644
        %v1142 = vrsqrt.pop %v1126
        %v1143 = vmul.f32 %v1142, %v1126
        %v1144 = vmul.f32 %v1143, %v1142
        %v1145 = vmul.f32 0.5, %v1144
        %v1146 = vsub.f32 1.5, %v1145
        %v1147 = vmul.f32 %v1142, %v1146
        %v1148 = vmul.f32 %v1126, %v1147
        %vm1149 = vcmp.eq.f32.partialorder %v1126, inf
        %v1150 = vsel %vm1149, %v1126, %v1148
        %vm1151 = vcmp.eq.f32.partialorder %v1126, 0.0
        %v1152 = vand.u32 %v1126, 2147483648
        %v1153 = vsel %vm1151, %v1152, %v1150
        %v1154 = vrsqrt.pop %v1127
        %v1155 = vmul.f32 %v1154, %v1127
        %v1156 = vmul.f32 %v1155, %v1154
        %v1157 = vmul.f32 0.5, %v1156
        %v1158 = vsub.f32 1.5, %v1157
        %v1159 = vmul.f32 %v1154, %v1158
        %v1160 = vmul.f32 %v1127, %v1159
        %vm1161 = vcmp.eq.f32.partialorder %v1127, inf
        %v1162 = vsel %vm1161, %v1127, %v1160
        %vm1163 = vcmp.eq.f32.partialorder %v1127, 0.0
        %v1164 = vand.u32 %v1127, 2147483648
        %v1165 = vsel %vm1163, %v1164, %v1162
        %v1166 = vrsqrt.pop %v1128
        %v1167 = vmul.f32 %v1166, %v1128
        %v1168 = vmul.f32 %v1167, %v1166
        %v1169 = vmul.f32 0.5, %v1168
        %v1170 = vsub.f32 1.5, %v1169
        %v1171 = vmul.f32 %v1166, %v1170
        %v1172 = vmul.f32 %v1128, %v1171
        %vm1173 = vcmp.eq.f32.partialorder %v1128, inf
        %v1174 = vsel %vm1173, %v1128, %v1172
        %vm1175 = vcmp.eq.f32.partialorder %v1128, 0.0
        %v1176 = vand.u32 %v1128, 2147483648
        %v1177 = vsel %vm1175, %v1176, %v1174
        %v1178 = vrsqrt.pop %v1129
        %v1179 = vmul.f32 %v1178, %v1129
        %v1180 = vmul.f32 %v1179, %v1178
        %v1181 = vmul.f32 0.5, %v1180
        %v1182 = vsub.f32 1.5, %v1181
        %v1183 = vmul.f32 %v1178, %v1182
        %v1184 = vmul.f32 %v1129, %v1183
        %vm1185 = vcmp.eq.f32.partialorder %v1129, inf
        %v1186 = vsel %vm1185, %v1129, %v1184
        %vm1187 = vcmp.eq.f32.partialorder %v1129, 0.0
        %v1188 = vand.u32 %v1129, 2147483648
        %v1189 = vsel %vm1187, %v1188, %v1186
        %v1190 = vrsqrt.pop %v1130
        %v1191 = vmul.f32 %v1190, %v1130
        %v1192 = vmul.f32 %v1191, %v1190
        %v1193 = vmul.f32 0.5, %v1192
        %v1194 = vsub.f32 1.5, %v1193
        %v1195 = vmul.f32 %v1190, %v1194
        %v1196 = vmul.f32 %v1130, %v1195
        %vm1197 = vcmp.eq.f32.partialorder %v1130, inf
        %v1198 = vsel %vm1197, %v1130, %v1196
        %vm1199 = vcmp.eq.f32.partialorder %v1130, 0.0
        %v1200 = vand.u32 %v1130, 2147483648
        %v1201 = vsel %vm1199, %v1200, %v1198
        %v1202 = vrsqrt.pop %v1131
        %v1203 = vmul.f32 %v1202, %v1131
        %v1204 = vmul.f32 %v1203, %v1202
        %v1205 = vmul.f32 0.5, %v1204
        %v1206 = vsub.f32 1.5, %v1205
        %v1207 = vmul.f32 %v1202, %v1206
        %v1208 = vmul.f32 %v1131, %v1207
        %vm1209 = vcmp.eq.f32.partialorder %v1131, inf
        %v1210 = vsel %vm1209, %v1131, %v1208
        %vm1211 = vcmp.eq.f32.partialorder %v1131, 0.0
        %v1212 = vand.u32 %v1131, 2147483648
        %v1213 = vsel %vm1211, %v1212, %v1210
        %v1214 = vrsqrt.pop %v1132
        %v1215 = vmul.f32 %v1214, %v1132
        %v1216 = vmul.f32 %v1215, %v1214
        %v1217 = vmul.f32 0.5, %v1216
        %v1218 = vsub.f32 1.5, %v1217
        %v1219 = vmul.f32 %v1214, %v1218
        %v1220 = vmul.f32 %v1132, %v1219
        %vm1221 = vcmp.eq.f32.partialorder %v1132, inf
        %v1222 = vsel %vm1221, %v1132, %v1220
        %vm1223 = vcmp.eq.f32.partialorder %v1132, 0.0
        %v1224 = vand.u32 %v1132, 2147483648
        %v1225 = vsel %vm1223, %v1224, %v1222
        %v1226 = vrsqrt.pop %v1133
        %v1227 = vmul.f32 %v1226, %v1133
        %v1228 = vmul.f32 %v1227, %v1226
        %v1229 = vmul.f32 0.5, %v1228
        %v1230 = vsub.f32 1.5, %v1229
        %v1231 = vmul.f32 %v1226, %v1230
        %v1232 = vmul.f32 %v1133, %v1231
        %vm1233 = vcmp.eq.f32.partialorder %v1133, inf
        %v1234 = vsel %vm1233, %v1133, %v1232
        %vm1235 = vcmp.eq.f32.partialorder %v1133, 0.0
        %v1236 = vand.u32 %v1133, 2147483648
        %v1237 = vsel %vm1235, %v1236, %v1234
        %v1238 = vrsqrt.pop %v1134
        %v1239 = vmul.f32 %v1238, %v1134
        %v1240 = vmul.f32 %v1239, %v1238
        %v1241 = vmul.f32 0.5, %v1240
        %v1242 = vsub.f32 1.5, %v1241
        %v1243 = vmul.f32 %v1238, %v1242
        %v1244 = vmul.f32 %v1134, %v1243
        %vm1245 = vcmp.eq.f32.partialorder %v1134, inf
        %v1246 = vsel %vm1245, %v1134, %v1244
        %vm1247 = vcmp.eq.f32.partialorder %v1134, 0.0
        %v1248 = vand.u32 %v1134, 2147483648
        %v1249 = vsel %vm1247, %v1248, %v1246
        %v1250 = vrsqrt.pop %v1135
        %v1251 = vmul.f32 %v1250, %v1135
        %v1252 = vmul.f32 %v1251, %v1250
        %v1253 = vmul.f32 0.5, %v1252
        %v1254 = vsub.f32 1.5, %v1253
        %v1255 = vmul.f32 %v1250, %v1254
        %v1256 = vmul.f32 %v1135, %v1255
        %vm1257 = vcmp.eq.f32.partialorder %v1135, inf
        %v1258 = vsel %vm1257, %v1135, %v1256
        %vm1259 = vcmp.eq.f32.partialorder %v1135, 0.0
        %v1260 = vand.u32 %v1135, 2147483648
        %v1261 = vsel %vm1259, %v1260, %v1258
        %v1262 = vrsqrt.pop %v1136
        %v1263 = vmul.f32 %v1262, %v1136
        %v1264 = vmul.f32 %v1263, %v1262
        %v1265 = vmul.f32 0.5, %v1264
        %v1266 = vsub.f32 1.5, %v1265
        %v1267 = vmul.f32 %v1262, %v1266
        %v1268 = vmul.f32 %v1136, %v1267
        %vm1269 = vcmp.eq.f32.partialorder %v1136, inf
        %v1270 = vsel %vm1269, %v1136, %v1268
        %vm1271 = vcmp.eq.f32.partialorder %v1136, 0.0
        %v1272 = vand.u32 %v1136, 2147483648
        %v1273 = vsel %vm1271, %v1272, %v1270
        %v1274 = vrsqrt.pop %v1137
        %v1275 = vmul.f32 %v1274, %v1137
        %v1276 = vmul.f32 %v1275, %v1274
        %v1277 = vmul.f32 0.5, %v1276
        %v1278 = vsub.f32 1.5, %v1277
        %v1279 = vmul.f32 %v1274, %v1278
        %v1280 = vmul.f32 %v1137, %v1279
        %vm1281 = vcmp.eq.f32.partialorder %v1137, inf
        %v1282 = vsel %vm1281, %v1137, %v1280
        %vm1283 = vcmp.eq.f32.partialorder %v1137, 0.0
        %v1284 = vand.u32 %v1137, 2147483648
        %v1285 = vsel %vm1283, %v1284, %v1282
        %v1286 = vrsqrt.pop %v1138
        %v1287 = vmul.f32 %v1286, %v1138
        %v1288 = vmul.f32 %v1287, %v1286
        %v1289 = vmul.f32 0.5, %v1288
        %v1290 = vsub.f32 1.5, %v1289
        %v1291 = vmul.f32 %v1286, %v1290
        %v1292 = vmul.f32 %v1138, %v1291
        %vm1293 = vcmp.eq.f32.partialorder %v1138, inf
        %v1294 = vsel %vm1293, %v1138, %v1292
        %vm1295 = vcmp.eq.f32.partialorder %v1138, 0.0
        %v1296 = vand.u32 %v1138, 2147483648
        %v1297 = vsel %vm1295, %v1296, %v1294
        %v1298 = vrsqrt.pop %v1139
        %v1299 = vmul.f32 %v1298, %v1139
        %v1300 = vmul.f32 %v1299, %v1298
        %v1301 = vmul.f32 0.5, %v1300
        %v1302 = vsub.f32 1.5, %v1301
        %v1303 = vmul.f32 %v1298, %v1302
        %v1304 = vmul.f32 %v1139, %v1303
        %vm1305 = vcmp.eq.f32.partialorder %v1139, inf
        %v1306 = vsel %vm1305, %v1139, %v1304
        %vm1307 = vcmp.eq.f32.partialorder %v1139, 0.0
        %v1308 = vand.u32 %v1139, 2147483648
        %v1309 = vsel %vm1307, %v1308, %v1306
        %v1310 = vrsqrt.pop %v1140
        %v1311 = vmul.f32 %v1310, %v1140
        %v1312 = vmul.f32 %v1311, %v1310
        %v1313 = vmul.f32 0.5, %v1312
        %v1314 = vsub.f32 1.5, %v1313
        %v1315 = vmul.f32 %v1310, %v1314
        %v1316 = vmul.f32 %v1140, %v1315
        %vm1317 = vcmp.eq.f32.partialorder %v1140, inf
        %v1318 = vsel %vm1317, %v1140, %v1316
        %vm1319 = vcmp.eq.f32.partialorder %v1140, 0.0
        %v1320 = vand.u32 %v1140, 2147483648
        %v1321 = vsel %vm1319, %v1320, %v1318
        %v1322 = vrsqrt.pop %v1141
        %v1323 = vmul.f32 %v1322, %v1141
        %v1324 = vmul.f32 %v1323, %v1322
        %v1325 = vmul.f32 0.5, %v1324
        %v1326 = vsub.f32 1.5, %v1325
        %v1327 = vmul.f32 %v1322, %v1326
        %v1328 = vmul.f32 %v1141, %v1327
        %vm1329 = vcmp.eq.f32.partialorder %v1141, inf
        %v1330 = vsel %vm1329, %v1141, %v1328
        %vm1331 = vcmp.eq.f32.partialorder %v1141, 0.0
        %v1332 = vand.u32 %v1141, 2147483648
        %v1333 = vsel %vm1331, %v1332, %v1330
        %vm1334 = vcmask 15368
        %1335 = vst.msk [vmem:[%s211] sm:$0xff] %vm1334, %v1153
        %1336 = vst.msk [vmem:[%s211 + $0x8] sm:$0xff] %vm1334, %v1165
        %1337 = vst.msk [vmem:[%s211 + $0x10] sm:$0xff] %vm1334, %v1177
        %1338 = vst.msk [vmem:[%s211 + $0x18] sm:$0xff] %vm1334, %v1189
        %1339 = vst.msk [vmem:[%s211 + $0x20] sm:$0xff] %vm1334, %v1201
        %1340 = vst.msk [vmem:[%s211 + $0x28] sm:$0xff] %vm1334, %v1213
        %1341 = vst.msk [vmem:[%s211 + $0x30] sm:$0xff] %vm1334, %v1225
        %1342 = vst.msk [vmem:[%s211 + $0x38] sm:$0xff] %vm1334, %v1237
        %1343 = vst.msk [vmem:[%s211 + $0x40] sm:$0xff] %vm1334, %v1249
        %1344 = vst.msk [vmem:[%s211 + $0x48] sm:$0xff] %vm1334, %v1261
        %1345 = vst.msk [vmem:[%s211 + $0x50] sm:$0xff] %vm1334, %v1273
        %1346 = vst.msk [vmem:[%s211 + $0x58] sm:$0xff] %vm1334, %v1285
        %1347 = vst.msk [vmem:[%s211 + $0x60] sm:$0xff] %vm1334, %v1297
        %1348 = vst.msk [vmem:[%s211 + $0x68] sm:$0xff] %vm1334, %v1309
        %1349 = vst.msk [vmem:[%s211 + $0x70] sm:$0xff] %vm1334, %v1321
        %1350 = vst.msk [vmem:[%s211 + $0x78] sm:$0xff] %vm1334, %v1333
        %s1351 = smul.u32 16, %s19
        %p1352 = scmp.lt.s32.totalorder %s1351, 63
        %s1353 = scalar_select %p1352, %s1351, 63
        %s1354 = smul.addr %s1353, 8
        %s1355 = scalar_lea.vmem %s2, %s1354
        // Predicated region
        $region37: #{tpu_custom_call.1} parent=27 // pred_check
          %p1356 = pneg %p89
        $region38: #{tpu_custom_call.1} parent=27 // pred_check_branch
          %1358 = sbr.rel (%p1356) target = $region40
        $region39: #{tpu_custom_call.1} parent=27 // pred_region
          %s1359 = smul.u32 16, %s19
        $region40: #{tpu_custom_call.1} parent=27 // pred_fallthru
          _
      $region28: #{tpu_custom_call.1} parent=5 // pred_fallthru
        _
      %p1360 = scmp.le.s32.totalorder 2, %s14
      // Predicated region
      $region41: #{tpu_custom_call.1} parent=5 // pred_check
        %p1361 = pneg %p1360
      $region42: #{tpu_custom_call.1} parent=5 // pred_check_branch
        %1363 = sbr.rel (%p1361) target = $region44
      $region43: #{tpu_custom_call.1} parent=5 // pred_region
        %s1364 = ssub.s32 %s14, 2
        // Predicated region
        $region45: #{tpu_custom_call.1} parent=43 // pred_check
          %p1365 = pneg %p95
        $region46: #{tpu_custom_call.1} parent=43 // pred_check_branch
          %1367 = sbr.rel (%p1365) target = $region48
        $region47: #{tpu_custom_call.1} parent=43 // pred_region
          %s1368 = smul.u32 16, %s20
          %p1369 = scmp.lt.s32.totalorder %s1368, 63
          %s1370 = scalar_select %p1369, %s1368, 63
          %s1371 = smul.addr %s1370, 8
          %s1372 = scalar_lea.vmem %s2, %s1371
        $region48: #{tpu_custom_call.1} parent=43 // pred_fallthru
          _
      $region44: #{tpu_custom_call.1} parent=5 // pred_fallthru
        _
    $region6: #{tpu_custom_call.1} parent=1 // loop_footer
      %s18 = sadd.s32 1, %s14
    $region7: #{tpu_custom_call.1} parent=1 // loop_footer_branch
      %13 = sbr.rel target = $region3
    $region8: #{tpu_custom_call.1} parent=1 // loop_exit
      _
    %1373 = vsyncpa [#allocation3], 1
    %s1374 = scalar_lea.sflag [#allocation3], 1
    %1375 = vsyncpa %s1374, 1
    %1376 = vsyncpa [#allocation5], 1
    %s1377 = scalar_lea.sflag [#allocation5], 1
    %1378 = vsyncpa %s1377, 1

</llo_original>
